<compile_context>
chip_gen: v5e
topology: v5e:2x2
jax: 0.10.0
libtpu: 0.0.40
codegen_flags: <defaults>
</compile_context>

<pallas_src>
import jax
import jax.numpy as jnp
from jax import lax
from jax.experimental import pallas as pl
from jax.experimental.pallas import tpu as pltpu

num_classes = 2
num_features = 6


def softmax_regression_kernel(x_ref, w_ref, b_ref, logits_ref, probas_ref):
    # x_ref:      (TB, F)  streamed batch tile (torch layout, batch-major)
    # w_ref:      (C, F)   torch Linear layout, resident across the grid
    # b_ref:      (C, 1)   resident across the grid
    # logits_ref: (C, TB)  lane-dense (batch in lanes)
    # probas_ref: (C, TB)
    x = x_ref[...]
    w = w_ref[...]
    b = b_ref[...]

    # logits^T = W @ X^T  (contract feature dim of both operands).  The MXU
    # emits the result with the batch in lanes, so stores are unmasked and no
    # in-kernel transpose is needed.
    logits = lax.dot_general(
        w, x,
        dimension_numbers=(((1,), (1,)), ((), ())),
        preferred_element_type=jnp.float32,
    ) + b                                           # (C, TB)

    c = logits.shape[0]
    if c == 2:
        # Elementwise two-row softmax: pure VPU/EUP on lane-dense rows, no
        # cross-lane reduction in the per-tile critical path.
        l0 = logits[0:1, :]
        l1 = logits[1:2, :]
        m = jnp.maximum(l0, l1)
        e0 = jnp.exp(l0 - m)
        e1 = jnp.exp(l1 - m)
        s = e0 + e1
        probas = jnp.concatenate([e0 / s, e1 / s], axis=0)
    else:
        # Generic path (class axis = sublanes): numerically-stable softmax.
        m = jnp.max(logits, axis=0, keepdims=True)
        e = jnp.exp(logits - m)
        probas = e / jnp.sum(e, axis=0, keepdims=True)

    logits_ref[...] = logits.astype(logits_ref.dtype)
    probas_ref[...] = probas.astype(probas_ref.dtype)


def softmax_regression(x, weight, bias, *, block_b=8192):
    """x: (B, F) float32; weight: (C, F) (torch layout); bias: (C,).

    Returns (logits, probas), each (B, C) float32 — same as the torch module.
    """
    x = x.astype(jnp.float32)
    weight = weight.astype(jnp.float32)
    B, F = x.shape
    C = weight.shape[0]
    bias_col = bias.reshape(C, 1).astype(jnp.float32)

    # Batch tile: multiple of 128 (output last dim = lanes), capped at block_b,
    # and sized so the grid has >= 2 steps when B permits (lets the 'parallel'
    # batch axis shard across the two TensorCores on v7x).
    block_b = max(128, (block_b // 128) * 128)
    tb = min(block_b, max(128, pl.cdiv(pl.cdiv(B, 2), 128) * 128))
    b_pad = pl.cdiv(B, tb) * tb
    if b_pad != B:
        x = jnp.pad(x, ((0, b_pad - B), (0, 0)))

    logits_t, probas_t = pl.pallas_call(
        softmax_regression_kernel,
        out_shape=(
            jax.ShapeDtypeStruct((C, b_pad), jnp.float32),
            jax.ShapeDtypeStruct((C, b_pad), jnp.float32),
        ),
        grid=(b_pad // tb,),
        in_specs=[
            pl.BlockSpec((tb, F), lambda i: (i, 0)),   # streamed batch tiles
            pl.BlockSpec((C, F), lambda i: (0, 0)),    # weight: VMEM-resident
            pl.BlockSpec((C, 1), lambda i: (0, 0)),    # bias:   VMEM-resident
        ],
        out_specs=(
            pl.BlockSpec((C, tb), lambda i: (0, i)),   # lane-dense outputs
            pl.BlockSpec((C, tb), lambda i: (0, i)),
        ),
        compiler_params=pltpu.CompilerParams(
            dimension_semantics=("parallel",),          # batch axis independent
        ),
    )(x, weight, bias_col)

    # Restore module API orientation (B, C); drop any padded rows.
    logits = logits_t[:, :B].T
    probas = probas_t[:, :B].T
    return logits, probas


if __name__ == "__main__":
    key = jax.random.PRNGKey(0)
    batch = 8
    kx, kw, kb, kx2 = jax.random.split(key, 4)

    # Deterministic example input.
    x = jax.random.normal(kx, (batch, num_features), dtype=jnp.float32)

    # 1) Module semantics: weight and bias are zero-initialized.
    weight0 = jnp.zeros((num_classes, num_features), dtype=jnp.float32)
    bias0 = jnp.zeros((num_classes,), dtype=jnp.float32)
    logits, probas = softmax_regression(x, weight0, bias0)
    jax.block_until_ready((logits, probas))
    ref_logits = x @ weight0.T + bias0
    ref_probas = jax.nn.softmax(ref_logits, axis=1)
    assert logits.shape == (batch, num_classes) and probas.shape == (batch, num_classes)
    assert jnp.allclose(logits, ref_logits, atol=1e-5)
    assert jnp.allclose(probas, ref_probas, atol=1e-5)

    # 2) Random parameters to exercise the full math path.
    weight = 0.1 * jax.random.normal(kw, (num_classes, num_features), dtype=jnp.float32)
    bias = 0.1 * jax.random.normal(kb, (num_classes,), dtype=jnp.float32)
    logits, probas = softmax_regression(x, weight, bias)
    jax.block_until_ready((logits, probas))
    ref_logits = x @ weight.T + bias
    ref_probas = jax.nn.softmax(ref_logits, axis=1)
    assert jnp.allclose(logits, ref_logits, atol=1e-5)
    assert jnp.allclose(probas, ref_probas, atol=1e-5)

    # 3) Non-multiple-of-tile batch: exercises padding + a multi-step grid.
    x2 = jax.random.normal(kx2, (200, num_features), dtype=jnp.float32)
    logits2, probas2 = softmax_regression(x2, weight, bias)
    jax.block_until_ready((logits2, probas2))
    ref_logits2 = x2 @ weight.T + bias
    ref_probas2 = jax.nn.softmax(ref_logits2, axis=1)
    assert logits2.shape == (200, num_classes)
    assert jnp.allclose(logits2, ref_logits2, atol=1e-5)
    assert jnp.allclose(probas2, ref_probas2, atol=1e-5)

    print("KERNEL_OK")
</pallas_src>

<mosaic_0001>
module attributes {stable_mosaic.version = 11 : i64} {
  func.func @softmax_regression_kernel(%arg0: i32, %arg1: memref<128x6xf32, #tpu.memory_space<vmem>>, %arg2: memref<2x6xf32, #tpu.memory_space<vmem>>, %arg3: memref<2x1xf32, #tpu.memory_space<vmem>>, %arg4: memref<2x128xf32, #tpu.memory_space<vmem>>, %arg5: memref<2x128xf32, #tpu.memory_space<vmem>>) attributes {dimension_semantics = [#tpu.dimension_semantics<parallel>], iteration_bounds = array<i64: 1>, scalar_prefetch = 0 : i64, scratch_operands = 0 : i64, tpu.core_type = #tpu.core_type<tc>, window_params = [{transform_indices = @transform_0, window_bounds = array<i64: 128, 6>}, {pipeline_mode = #tpu.pipeline_mode<synchronous>, transform_indices = @transform_1, window_bounds = array<i64: 2, 6>}, {pipeline_mode = #tpu.pipeline_mode<synchronous>, transform_indices = @transform_2, window_bounds = array<i64: 2, 1>}, {transform_indices = @transform_3, window_bounds = array<i64: 2, 128>}, {transform_indices = @transform_4, window_bounds = array<i64: 2, 128>}]} {
    %c0 = arith.constant 0 : index
    %c0_0 = arith.constant 0 : index
    %0 = vector.load %arg1[%c0, %c0_0] : memref<128x6xf32, #tpu.memory_space<vmem>>, vector<128x6xf32>
    %c0_1 = arith.constant 0 : index
    %c0_2 = arith.constant 0 : index
    %1 = vector.load %arg2[%c0_1, %c0_2] : memref<2x6xf32, #tpu.memory_space<vmem>>, vector<2x6xf32>
    %c0_3 = arith.constant 0 : index
    %c0_4 = arith.constant 0 : index
    %2 = vector.load %arg3[%c0_3, %c0_4] : memref<2x1xf32, #tpu.memory_space<vmem>>, vector<2x1xf32>
    %cst = arith.constant dense<0.000000e+00> : vector<2x128xf32>
    %3 = tpu.matmul %1, %0, %cst {dimension_numbers = #tpu.dot_dimension_numbers<[1], [1], [0], [0], [0, 0, 1, 0], [], []>} : vector<2x6xf32>, vector<128x6xf32>, vector<2x128xf32> -> vector<2x128xf32>
    %4 = vector.broadcast %2 : vector<2x1xf32> to vector<2x128xf32>
    %5 = arith.addf %3, %4 : vector<2x128xf32>
    %6 = vector.extract_strided_slice %5 {offsets = [0, 0], sizes = [1, 128], strides = [1, 1]} : vector<2x128xf32> to vector<1x128xf32>
    %7 = vector.extract_strided_slice %5 {offsets = [1, 0], sizes = [1, 128], strides = [1, 1]} : vector<2x128xf32> to vector<1x128xf32>
    %8 = arith.maximumf %6, %7 : vector<1x128xf32>
    %9 = arith.subf %6, %8 : vector<1x128xf32>
    %10 = math.exp %9 : vector<1x128xf32>
    %11 = arith.subf %7, %8 : vector<1x128xf32>
    %12 = math.exp %11 : vector<1x128xf32>
    %13 = arith.addf %10, %12 : vector<1x128xf32>
    %14 = arith.divf %10, %13 : vector<1x128xf32>
    %15 = arith.divf %12, %13 : vector<1x128xf32>
    %16 = tpu.concatenate %14, %15 in 0 : vector<1x128xf32>, vector<1x128xf32> -> vector<2x128xf32>
    %c0_5 = arith.constant 0 : index
    %c0_6 = arith.constant 0 : index
    %17 = vector.load %arg4[%c0_5, %c0_6] : memref<2x128xf32, #tpu.memory_space<vmem>>, vector<2x128xf32>
    tpu.vector_store %arg4[%c0_5, %c0_6], %5 {strides = array<i32>} : memref<2x128xf32, #tpu.memory_space<vmem>>, vector<2x128xf32>,
    %c0_7 = arith.constant 0 : index
    %c0_8 = arith.constant 0 : index
    %18 = vector.load %arg5[%c0_7, %c0_8] : memref<2x128xf32, #tpu.memory_space<vmem>>, vector<2x128xf32>
    tpu.vector_store %arg5[%c0_7, %c0_8], %16 {strides = array<i32>} : memref<2x128xf32, #tpu.memory_space<vmem>>, vector<2x128xf32>,
    return
  }
  func.func @transform_0(%arg0: i32) -> (i32, i32) {
    %c0_i32 = arith.constant 0 : i32
    %c0_i32_0 = arith.constant 0 : i32
    return %arg0, %c0_i32 : i32, i32
  }
  func.func @transform_1(%arg0: i32) -> (i32, i32) {
    %c0_i32 = arith.constant 0 : i32
    %c0_i32_0 = arith.constant 0 : i32
    %c0_i32_1 = arith.constant 0 : i32
    return %c0_i32, %c0_i32_0 : i32, i32
  }
  func.func @transform_2(%arg0: i32) -> (i32, i32) {
    %c0_i32 = arith.constant 0 : i32
    %c0_i32_0 = arith.constant 0 : i32
    %c0_i32_1 = arith.constant 0 : i32
    return %c0_i32, %c0_i32_0 : i32, i32
  }
  func.func @transform_3(%arg0: i32) -> (i32, i32) {
    %c0_i32 = arith.constant 0 : i32
    %c0_i32_0 = arith.constant 0 : i32
    return %c0_i32, %arg0 : i32, i32
  }
  func.func @transform_4(%arg0: i32) -> (i32, i32) {
    %c0_i32 = arith.constant 0 : i32
    %c0_i32_0 = arith.constant 0 : i32
    return %c0_i32, %arg0 : i32, i32
  }
}

</mosaic_0001>

<llo_original>
// kernel: tpu_custom_call.1
$region0: #{tpu_custom_call.1}
  #allocation0 [shape = 'u32[]', space=smem, size = 0x4, offset = 0x4, fixed_abs, tag = 'smem constant byte address 0x4 - core index']
  #allocation1 [shape = 'u32[72,128]{1,0:T(1,128)}', space=vmem, size = 0x9000, scoped, tag = 'internal scratch']
  %s0 = inlined_call_operand.vmem [shape: f32[128,6], index: 0, kind: input, shape index: {}]
  %s1 = inlined_call_operand.vmem [shape: f32[2,6], index: 1, kind: input, shape index: {}]
  %s2 = inlined_call_operand.vmem [shape: f32[2,1], index: 2, kind: input, shape index: {}]
  %s3 = inlined_call_operand.hbm [shape: f32[2,128], index: 3, kind: output, shape index: {0}]
  %s4 = inlined_call_operand.hbm [shape: f32[2,128], index: 4, kind: output, shape index: {1}]
  %5 = xla_tuple %s3, %s4
  %s6 = sld [smem:[#allocation0]]
  $region30: #{tpu_custom_call.1} parent=0
    _
  %s8 = ssub.s32 1, %s6
  %s9 = scalar_select 0, %s8, %s6
  $region1: #{tpu_custom_call.1} parent=0
    #allocation2 [shape = 'u8[1024]{0}', space=vmem, size = 0x400, scoped, tag = 'output window, operand 0, single buffered']
    #allocation3 [shape = 's32[1]{0}', space=sflag, size = 0x4, scoped, tag = 'scoped memory for tpu_custom_call.1']
    #allocation4 [shape = 'u8[1024]{0}', space=vmem, size = 0x400, scoped, tag = 'output window, operand 1, single buffered']
    #allocation5 [shape = 's32[1]{0}', space=sflag, size = 0x4, scoped, tag = 'scoped memory for tpu_custom_call.1']
    %10 = vsyncpa [#allocation3], 0
    %11 = vsyncpa [#allocation5], 0
    // Predicated region
    $region2: #{tpu_custom_call.1} parent=1 // pred_check
      _
    $region3: #{tpu_custom_call.1} parent=1 // pred_check_branch
      %13 = sbr.rel (0) target = $region5
    $region4: #{tpu_custom_call.1} parent=1 // pred_region
      _
    $region5: #{tpu_custom_call.1} parent=1 // pred_fallthru
      _
    // Predicated region
    $region6: #{tpu_custom_call.1} parent=1 // pred_check
      _
    $region7: #{tpu_custom_call.1} parent=1 // pred_check_branch
      %15 = sbr.rel (0) target = $region9
    $region8: #{tpu_custom_call.1} parent=1 // pred_region
      _
    $region9: #{tpu_custom_call.1} parent=1 // pred_fallthru
      _
    // Predicated region
    $region10: #{tpu_custom_call.1} parent=1 // pred_check
      _
    $region11: #{tpu_custom_call.1} parent=1 // pred_check_branch
      %17 = sbr.rel (0) target = $region13
    $region12: #{tpu_custom_call.1} parent=1 // pred_region
      _
    $region13: #{tpu_custom_call.1} parent=1 // pred_fallthru
      _
    %v18 = vld [vmem:[%s0] sm:$0xff]
    %v19 = vld [vmem:[%s0 + $0x8] sm:$0xff]
    %v20 = vld [vmem:[%s0 + $0x10] sm:$0xff]
    %v21 = vld [vmem:[%s0 + $0x18] sm:$0xff]
    %v22 = vld [vmem:[%s0 + $0x20] sm:$0xff]
    %v23 = vld [vmem:[%s0 + $0x28] sm:$0xff]
    %v24 = vld [vmem:[%s0 + $0x30] sm:$0xff]
    %v25 = vld [vmem:[%s0 + $0x38] sm:$0xff]
    %v26 = vld [vmem:[%s0 + $0x40] sm:$0xff]
    %v27 = vld [vmem:[%s0 + $0x48] sm:$0xff]
    %v28 = vld [vmem:[%s0 + $0x50] sm:$0xff]
    %v29 = vld [vmem:[%s0 + $0x58] sm:$0xff]
    %v30 = vld [vmem:[%s0 + $0x60] sm:$0xff]
    %v31 = vld [vmem:[%s0 + $0x68] sm:$0xff]
    %v32 = vld [vmem:[%s0 + $0x70] sm:$0xff]
    %v33 = vld [vmem:[%s0 + $0x78] sm:$0xff]
    %v34 = vld [vmem:[%s1] sm:$0x3]
    %v35 = vld [vmem:[%s2] sm:$0x3]
    %37 = vset.pattern.permute.xlu0 0
    %38 = vperm.xlu0 %37, %v35
    %v39 = vpop.permute.xlu0 %38
    %vm41 = vcmask 48128
    %v43 = vsel %vm41, %v34, 0
    %v46 = vsel %vm41, %v18, 0
    %v49 = vsel %vm41, %v19, 0
    %v52 = vsel %vm41, %v20, 0
    %v55 = vsel %vm41, %v21, 0
    %v58 = vsel %vm41, %v22, 0
    %v61 = vsel %vm41, %v23, 0
    %v64 = vsel %vm41, %v24, 0
    %v67 = vsel %vm41, %v25, 0
    %v70 = vsel %vm41, %v26, 0
    %v73 = vsel %vm41, %v27, 0
    %v76 = vsel %vm41, %v28, 0
    %v79 = vsel %vm41, %v29, 0
    %v82 = vsel %vm41, %v30, 0
    %v85 = vsel %vm41, %v31, 0
    %v88 = vsel %vm41, %v32, 0
    %v91 = vsel %vm41, %v33, 0
    %93 = vmatpush.xpose.msra.mxu0 %v91
    %94 = vmatpush.xpose.msra.mxu0 %v88
    %95 = vmatpush.xpose.msra.mxu0 %v85
    %96 = vmatpush.xpose.msra.mxu0 %v82
    %97 = vmatpush.xpose.msra.mxu0 %v79
    %98 = vmatpush.xpose.msra.mxu0 %v76
    %99 = vmatpush.xpose.msra.mxu0 %v73
    %100 = vmatpush.xpose.msra.mxu0 %v70
    %101 = vmatpush.xpose.msra.mxu0 %v67
    %102 = vmatpush.xpose.msra.mxu0 %v64
    %103 = vmatpush.xpose.msra.mxu0 %v61
    %104 = vmatpush.xpose.msra.mxu0 %v58
    %105 = vmatpush.xpose.msra.mxu0 %v55
    %106 = vmatpush.xpose.msra.mxu0 %v52
    %107 = vmatpush.xpose.msra.mxu0 %v49
    %108 = vmatpush.xpose.msra.mxu0 %v46
    %109 = vmatmul.f32.gmra.mxu0 %v43
    %v110 = vpop.f32.mrf.mxu0
    %v111 = vadd.f32 %v39, %v110
    %112 = vdwg.mxu0
    %v114 = vrot.slane %v111, 1
    %v116 = vmax.f32 %v111, %v114
    %v117 = vsub.f32 %v111, %v116
    %v118 = vmul.f32 %v117, 1.442695
    %v119 = vpow.pop %v118
    %v121 = vrot.slane %v116, 7
    %v123 = vsub.f32 %v111, %v121
    %v124 = vmul.f32 %v123, 1.442695
    %v125 = vpow.pop %v124
    %v127 = vrot.slane %v125, 1
    %v129 = vadd.f32 %v119, %v127
    %v130 = vrcp.pop %v129
    %v131 = vmul.f32 %v129, %v130
    %v132 = vsub.f32 1.0, %v131
    %v133 = vmul.f32 %v130, %v132
    %v134 = vadd.f32 %v130, %v133
    %vm135 = vweird.f32 %v129
    %vm136 = vweird.f32 %v130
    %vm137 = vmor %vm135, %vm136
    %v138 = vsel %vm137, %v130, %v134
    %v139 = vand.u32 2147483647, %v129
    %vm140 = vcmp.eq.f32.partialorder %v139, 8.507059e+37
    %v141 = vand.u32 %v129, 2147483648
    %v142 = vor.u32 1.1754944e-38, %v141
    %v143 = vsel %vm140, %v142, %v138
    %v144 = vmul.f32 %v119, %v143
    %v146 = vrot.slane %v129, 7
    %v148 = vrcp.pop %v146
    %v149 = vmul.f32 %v146, %v148
    %v150 = vsub.f32 1.0, %v149
    %v151 = vmul.f32 %v148, %v150
    %v152 = vadd.f32 %v148, %v151
    %vm153 = vweird.f32 %v146
    %vm154 = vweird.f32 %v148
    %vm155 = vmor %vm153, %vm154
    %v156 = vsel %vm155, %v148, %v152
    %v157 = vand.u32 2147483647, %v146
    %vm158 = vcmp.eq.f32.partialorder %v157, 8.507059e+37
    %v159 = vand.u32 %v146, 2147483648
    %v160 = vor.u32 1.1754944e-38, %v159
    %v161 = vsel %vm158, %v160, %v156
    %v162 = vmul.f32 %v125, %v161
    %vm163 = vcmask 1040384
    %v164 = vsel %vm163, %v144, %v162
    %165 = vst [vmem:[#allocation2] sm:$0x3] %v111
    %166 = vst [vmem:[#allocation4] sm:$0x3] %v164
    // Predicated region
    $region14: #{tpu_custom_call.1} parent=1 // pred_check
      _
    $region15: #{tpu_custom_call.1} parent=1 // pred_check_branch
      %168 = sbr.rel (0) target = $region17
    $region16: #{tpu_custom_call.1} parent=1 // pred_region
      %170 = vsyncadd [#allocation3], 0
      %s172 = sshll.u32 [#allocation2], 4
      %s173 = int_to_ptr.vmem [resolvable:$true] %s172
      %s174 = sshll.u32 %s3, 4
      %s175 = int_to_ptr.hbm [resolvable:$true] %s174
      %177 = dma.vmem_to_hbm [thread:$0]  %s173, 32, %s175, [#allocation3]
    $region17: #{tpu_custom_call.1} parent=1 // pred_fallthru
      _
    // Predicated region
    $region18: #{tpu_custom_call.1} parent=1 // pred_check
      _
    $region19: #{tpu_custom_call.1} parent=1 // pred_check_branch
      %179 = sbr.rel (0) target = $region21
    $region20: #{tpu_custom_call.1} parent=1 // pred_region
      %181 = vsyncadd [#allocation5], 0
      %s183 = sshll.u32 [#allocation4], 4
      %s184 = int_to_ptr.vmem [resolvable:$true] %s183
      %s185 = sshll.u32 %s4, 4
      %s186 = int_to_ptr.hbm [resolvable:$true] %s185
      %188 = dma.vmem_to_hbm [thread:$0]  %s184, 32, %s186, [#allocation5]
    $region21: #{tpu_custom_call.1} parent=1 // pred_fallthru
      _
    // Predicated region
    $region22: #{tpu_custom_call.1} parent=1 // pred_check
      _
    $region23: #{tpu_custom_call.1} parent=1 // pred_check_branch
      %190 = sbr.rel (0) target = $region25
    $region24: #{tpu_custom_call.1} parent=1 // pred_region
      %192 = dma.done [#allocation3], 32
    $region25: #{tpu_custom_call.1} parent=1 // pred_fallthru
      _
    // Predicated region
    $region26: #{tpu_custom_call.1} parent=1 // pred_check
      _
    $region27: #{tpu_custom_call.1} parent=1 // pred_check_branch
      %194 = sbr.rel (0) target = $region29
    $region28: #{tpu_custom_call.1} parent=1 // pred_region
      %196 = dma.done [#allocation5], 32
    $region29: #{tpu_custom_call.1} parent=1 // pred_fallthru
      _
    %197 = vsyncpa [#allocation3], 1
    %198 = vsyncpa [#allocation5], 1

</llo_original>
